<compile_context>
chip_gen: v6e
topology: v6e:2x2x1
jax: 0.10.0
libtpu: 0.0.40
codegen_flags: <defaults>
</compile_context>

<pallas_src>
import jax
import jax.numpy as jnp
from jax.experimental import pallas as pl
from jax.experimental.pallas import tpu as pltpu

LANE = 128
_MiB = 1024 * 1024


def _add_pe_kernel(x_ref, pe_ref, o_ref):
    # Elementwise add; pe block has a leading size-1 dim that broadcasts over the
    # batch rows of the x/out blocks in VMEM.
    o_ref[...] = x_ref[...] + pe_ref[...]


def _round_up(v, m):
    return -(-v // m) * m


def _vmem_limit(step_bytes):
    # Explicit scoped-VMEM limit: double-buffered blocks + headroom, floored at
    # 8 MiB (cheap, always available) and capped at 24 MiB (fits inside the v7x
    # 32 MiB scoped default with room to spare).
    return int(min(max(2 * step_bytes + 4 * _MiB, 8 * _MiB), 24 * _MiB))


def positional_encoding_2d(x, pe, *, vmem_budget_bytes=8 * _MiB, donate_x=False):
    """x: (B, C, H, W), pe: (1, C, H, W) -> (B, C, H, W) = x + pe (broadcast over batch)."""
    B, C, H, W = x.shape
    assert pe.shape == (1, C, H, W), (pe.shape, (1, C, H, W))

    f_total = C * H * W
    dtype_bytes = jnp.dtype(x.dtype).itemsize
    # Rows needed to fill a packed vreg: 8 for 32-bit, 16 for 16-bit, 32 for 8-bit.
    sublane = max(8, 32 // max(1, dtype_bytes))

    # VMEM per feature element per pipeline step (single buffer):
    #   x block (B rows) + out block (B rows) + pe block (1 row).
    per_elem = (2 * B + 1) * dtype_bytes

    aliases = {0: 0} if donate_x else {}

    if f_total % LANE == 0:
        # ---- Lane-dense 3D layout (B, R, 128): the sublane axis is the R rows, so
        # vregs are full regardless of batch size.
        R = f_total // LANE
        rows_budget = max(
            sublane,
            (vmem_budget_bytes // (2 * per_elem * LANE)) // sublane * sublane)
        # Aim for >= 4 grid steps when possible (v7x dual-TC + pipelining); an extra
        # step costs only ~0.35us on single-TC chips.
        rows_target = max(sublane, _round_up(pl.cdiv(R, 4), sublane))
        rows_tile = min(rows_budget, rows_target)
        n_tiles = pl.cdiv(R, rows_tile)

        x3 = x.reshape(B, R, LANE)        # free: reshape of contiguous NCHW data
        pe3 = pe.reshape(1, R, LANE)

        step_bytes = per_elem * rows_tile * LANE
        out3 = pl.pallas_call(
            _add_pe_kernel,
            out_shape=jax.ShapeDtypeStruct((B, R, LANE), x.dtype),
            grid_spec=pltpu.PrefetchScalarGridSpec(
                num_scalar_prefetch=0,
                grid=(n_tiles,),
                in_specs=[
                    pl.BlockSpec((B, rows_tile, LANE), lambda t: (0, t, 0)),
                    pl.BlockSpec((1, rows_tile, LANE), lambda t: (0, t, 0)),
                ],
                out_specs=pl.BlockSpec((B, rows_tile, LANE), lambda t: (0, t, 0)),
            ),
            compiler_params=pltpu.CompilerParams(
                dimension_semantics=("parallel",),
                vmem_limit_bytes=_vmem_limit(step_bytes),
            ),
            input_output_aliases=aliases,
        )(x3, pe3)
        return out3.reshape(B, C, H, W)

    # ---- Fallback (C*H*W not a multiple of 128): unpadded 2D (B, f_total) layout with
    # a lane-aligned tile; Pallas clips the DMA for the partial final block and masks
    # OOB output lanes. Garbage in the VMEM tail is harmless for an elementwise add
    # (do NOT reuse this pattern for reductions over the feature axis).
    tile_budget = max(LANE, (vmem_budget_bytes // (2 * per_elem)) // LANE * LANE)
    tile_target = max(LANE, _round_up(pl.cdiv(f_total, 4), LANE))
    tile = min(tile_budget, tile_target)
    n_tiles = pl.cdiv(f_total, tile)

    x2 = x.reshape(B, f_total)
    pe2 = pe.reshape(1, f_total)

    step_bytes = per_elem * tile
    out2 = pl.pallas_call(
        _add_pe_kernel,
        out_shape=jax.ShapeDtypeStruct((B, f_total), x.dtype),
        grid_spec=pltpu.PrefetchScalarGridSpec(
            num_scalar_prefetch=0,
            grid=(n_tiles,),
            in_specs=[
                pl.BlockSpec((B, tile), lambda t: (0, t)),
                pl.BlockSpec((1, tile), lambda t: (0, t)),
            ],
            out_specs=pl.BlockSpec((B, tile), lambda t: (0, t)),
        ),
        compiler_params=pltpu.CompilerParams(
            dimension_semantics=("parallel",),
            vmem_limit_bytes=_vmem_limit(step_bytes),
        ),
        input_output_aliases=aliases,
    )(x2, pe2)
    return out2.reshape(B, C, H, W)


if __name__ == "__main__":
    # Module config consistent with __init__(channels, height, width)
    batch, channels, height, width = 2, 4, 16, 16

    key = jax.random.PRNGKey(0)
    k_x, k_pe = jax.random.split(key)

    # Input activations
    x = jax.random.normal(k_x, (batch, channels, height, width), dtype=jnp.float32)
    # Deterministic parameter init matching nn.init.normal_(self.pe, std=0.02)
    pe = 0.02 * jax.random.normal(k_pe, (1, channels, height, width), dtype=jnp.float32)

    out = jax.block_until_ready(positional_encoding_2d(x, pe))
    ref = x + pe
    assert out.shape == x.shape and out.dtype == x.dtype
    assert jnp.allclose(out, ref, atol=1e-6, rtol=1e-6)

    # Also exercise the non-multiple-of-128 fallback (no pad/slice, masked tail block).
    x_odd = jax.random.normal(k_x, (batch, 3, 10, 10), dtype=jnp.float32)
    pe_odd = 0.02 * jax.random.normal(k_pe, (1, 3, 10, 10), dtype=jnp.float32)
    out_odd = jax.block_until_ready(positional_encoding_2d(x_odd, pe_odd))
    assert jnp.allclose(out_odd, x_odd + pe_odd, atol=1e-6, rtol=1e-6)

    print("KERNEL_OK")
</pallas_src>

<mosaic_0001>
module attributes {stable_mosaic.version = 11 : i64} {
  func.func @_add_pe_kernel(%arg0: i32, %arg1: memref<2x8x128xf32, #tpu.memory_space<vmem>>, %arg2: memref<1x8x128xf32, #tpu.memory_space<vmem>>, %arg3: memref<2x8x128xf32, #tpu.memory_space<vmem>>) attributes {dimension_semantics = [#tpu.dimension_semantics<parallel>], iteration_bounds = array<i64: 1>, scalar_prefetch = 0 : i64, scratch_operands = 0 : i64, tpu.core_type = #tpu.core_type<tc>, window_params = [{transform_indices = @transform_0, window_bounds = array<i64: 2, 8, 128>}, {transform_indices = @transform_1, window_bounds = array<i64: 1, 8, 128>}, {transform_indices = @transform_2, window_bounds = array<i64: 2, 8, 128>}]} {
    %c0 = arith.constant 0 : index
    %c0_0 = arith.constant 0 : index
    %c0_1 = arith.constant 0 : index
    %0 = vector.load %arg1[%c0, %c0_0, %c0_1] : memref<2x8x128xf32, #tpu.memory_space<vmem>>, vector<2x8x128xf32>
    %c0_2 = arith.constant 0 : index
    %c0_3 = arith.constant 0 : index
    %c0_4 = arith.constant 0 : index
    %1 = vector.load %arg2[%c0_2, %c0_3, %c0_4] : memref<1x8x128xf32, #tpu.memory_space<vmem>>, vector<1x8x128xf32>
    %2 = vector.broadcast %1 : vector<1x8x128xf32> to vector<2x8x128xf32>
    %3 = arith.addf %0, %2 : vector<2x8x128xf32>
    %c0_5 = arith.constant 0 : index
    %c0_6 = arith.constant 0 : index
    %c0_7 = arith.constant 0 : index
    %4 = vector.load %arg3[%c0_5, %c0_6, %c0_7] : memref<2x8x128xf32, #tpu.memory_space<vmem>>, vector<2x8x128xf32>
    tpu.vector_store %arg3[%c0_5, %c0_6, %c0_7], %3 {strides = array<i32>} : memref<2x8x128xf32, #tpu.memory_space<vmem>>, vector<2x8x128xf32>,
    return
  }
  func.func @transform_0(%arg0: i32) -> (i32, i32, i32) {
    %c0_i32 = arith.constant 0 : i32
    %c0_i32_0 = arith.constant 0 : i32
    %c0_i32_1 = arith.constant 0 : i32
    return %c0_i32, %arg0, %c0_i32_0 : i32, i32, i32
  }
  func.func @transform_1(%arg0: i32) -> (i32, i32, i32) {
    %c0_i32 = arith.constant 0 : i32
    %c0_i32_0 = arith.constant 0 : i32
    %c0_i32_1 = arith.constant 0 : i32
    return %c0_i32, %arg0, %c0_i32_0 : i32, i32, i32
  }
  func.func @transform_2(%arg0: i32) -> (i32, i32, i32) {
    %c0_i32 = arith.constant 0 : i32
    %c0_i32_0 = arith.constant 0 : i32
    %c0_i32_1 = arith.constant 0 : i32
    return %c0_i32, %arg0, %c0_i32_0 : i32, i32, i32
  }
}

</mosaic_0001>

<llo_original>
// kernel: tpu_custom_call.1
$region0: #{tpu_custom_call.1}
  #allocation0 [shape = 'u32[]', space=smem, size = 0x4, offset = 0x4, fixed_abs, tag = 'smem constant byte address 0x4 - core index']
  #allocation1 [shape = 'u32[144,128]{1,0:T(1,128)}', space=vmem, size = 0x12000, scoped, tag = 'internal scratch']
  %s0 = inlined_call_operand.hbm [shape: f32[2,8,128], index: 0, kind: input, shape index: {}]
  %s1 = inlined_call_operand.hbm [shape: f32[1,8,128], index: 1, kind: input, shape index: {}]
  %s2 = inlined_call_operand.hbm [shape: f32[2,8,128], index: 2, kind: output, shape index: {}]
  %s3 = sld [smem:[#allocation0]]
  $region26: #{tpu_custom_call.1} parent=0
    _
  %s5 = ssub.s32 1, %s3
  %s6 = scalar_select 0, %s5, %s3
  $region1: #{tpu_custom_call.1} parent=0
    #allocation2 [shape = 'u8[8192]{0}', space=vmem, size = 0x2000, scoped, tag = 'input window, operand 0, single buffered']
    #allocation3 [shape = 's32[1]{0}', space=sflag, size = 0x4, scoped, tag = 'scoped memory for tpu_custom_call.1']
    #allocation4 [shape = 's32[1]{0}', space=sflag, size = 0x4, scoped, tag = 'scoped memory for tpu_custom_call.1']
    #allocation5 [shape = 'u8[4096]{0}', space=vmem, size = 0x1000, scoped, tag = 'input window, operand 1, single buffered']
    #allocation6 [shape = 's32[1]{0}', space=sflag, size = 0x4, scoped, tag = 'scoped memory for tpu_custom_call.1']
    #allocation7 [shape = 'u8[8192]{0}', space=vmem, size = 0x2000, scoped, tag = 'output window, operand 0, single buffered']
    %7 = vsyncpa [#allocation3], 0
    %8 = vsyncpa [#allocation6], 0
    %9 = vsyncpa [#allocation4], 0
    // Predicated region
    $region2: #{tpu_custom_call.1} parent=1 // pred_check
      _
    $region3: #{tpu_custom_call.1} parent=1 // pred_check_branch
      %11 = sbr.rel (0) target = $region5
    $region4: #{tpu_custom_call.1} parent=1 // pred_region
      %s13 = ssub.s32 256, 256
      %14 = vsyncadd [#allocation3], %s13
      %s15 = sshll.u32 [#allocation2], 4
      %s16 = int_to_ptr.vmem [resolvable:$true] %s15
      %21 = dma.hbm_to_vmem [thread:$0]  %s0, 256, %s16, [#allocation3], 128, 128, 8
    $region5: #{tpu_custom_call.1} parent=1 // pred_fallthru
      _
    // Predicated region
    $region6: #{tpu_custom_call.1} parent=1 // pred_check
      _
    $region7: #{tpu_custom_call.1} parent=1 // pred_check_branch
      %23 = sbr.rel (0) target = $region9
    $region8: #{tpu_custom_call.1} parent=1 // pred_region
      %s25 = ssub.s32 128, 128
      %26 = vsyncadd [#allocation6], %s25
      %s28 = sshll.u32 [#allocation5], 4
      %s29 = int_to_ptr.vmem [resolvable:$true] %s28
      %31 = dma.hbm_to_vmem [thread:$0]  %s1, 128, %s29, [#allocation6]
    $region9: #{tpu_custom_call.1} parent=1 // pred_fallthru
      _
    // Predicated region
    $region10: #{tpu_custom_call.1} parent=1 // pred_check
      _
    $region11: #{tpu_custom_call.1} parent=1 // pred_check_branch
      %33 = sbr.rel (0) target = $region13
    $region12: #{tpu_custom_call.1} parent=1 // pred_region
      %34 = dma.done [#allocation3], 256
    $region13: #{tpu_custom_call.1} parent=1 // pred_fallthru
      _
    // Predicated region
    $region14: #{tpu_custom_call.1} parent=1 // pred_check
      _
    $region15: #{tpu_custom_call.1} parent=1 // pred_check_branch
      %36 = sbr.rel (0) target = $region17
    $region16: #{tpu_custom_call.1} parent=1 // pred_region
      %37 = dma.done [#allocation6], 128
    $region17: #{tpu_custom_call.1} parent=1 // pred_fallthru
      _
    %v38 = vld [vmem:[#allocation2] sm:$0xff]
    %v39 = vld [vmem:[#allocation2 + $0x8] sm:$0xff]
    %v40 = vld [vmem:[#allocation5] sm:$0xff]
    %v41 = vadd.f32 %v38, %v40
    %v42 = vadd.f32 %v39, %v40
    %43 = vst [vmem:[#allocation7] sm:$0xff] %v41
    %44 = vst [vmem:[#allocation7 + $0x8] sm:$0xff] %v42
    // Predicated region
    $region18: #{tpu_custom_call.1} parent=1 // pred_check
      _
    $region19: #{tpu_custom_call.1} parent=1 // pred_check_branch
      %46 = sbr.rel (0) target = $region21
    $region20: #{tpu_custom_call.1} parent=1 // pred_region
      %s48 = ssub.s32 256, 256
      %49 = vsyncadd [#allocation4], %s48
      %s50 = sshll.u32 [#allocation7], 4
      %s51 = int_to_ptr.vmem [resolvable:$true] %s50
      %56 = dma.vmem_to_hbm [thread:$0]  %s51, 256, %s2, [#allocation4], 128, 128, 8
    $region21: #{tpu_custom_call.1} parent=1 // pred_fallthru
      _
    // Predicated region
    $region22: #{tpu_custom_call.1} parent=1 // pred_check
      _
    $region23: #{tpu_custom_call.1} parent=1 // pred_check_branch
      %58 = sbr.rel (0) target = $region25
    $region24: #{tpu_custom_call.1} parent=1 // pred_region
      %59 = dma.done [#allocation4], 256
    $region25: #{tpu_custom_call.1} parent=1 // pred_fallthru
      _
    %60 = vsyncpa [#allocation3], 1
    %61 = vsyncpa [#allocation6], 1
    %62 = vsyncpa [#allocation4], 1

</llo_original>
